<compile_context>
chip_gen: v7x
topology: tpu7x:2x2x1
jax: 0.10.0
libtpu: 0.0.40
codegen_flags: <defaults>
</compile_context>

<pallas_src>
import functools

import jax
import jax.numpy as jnp
from jax.experimental import pallas as pl
from jax.experimental.pallas import tpu as pltpu


def _make_fused_kernel(pool: int, rows_out: int):
    """Kernel for the fully-fused Encoder (all blocks, all batch rows)."""

    def kernel(cols_ref, w_ref, o_ref):
        # cols_ref : (pool*rows_out, K)  phase-major im2col windows (+ ones col)
        # w_ref    : (K, N)              fused conv weights; BN scale folded in,
        #                                conv-bias/BN shift embedded as bias row
        # o_ref    : (rows_out, N)       pooled output, lane-dense (N = 4*C_out)
        y = jnp.dot(cols_ref[...], w_ref[...],
                    preferred_element_type=jnp.float32)
        # MaxPool1d(pool): max over `pool` contiguous sublane blocks (rows are
        # phase-major, rows_out is sublane-aligned in the demo) -- pure VPU,
        # no reshape/relayout, no cross-sublane reduce.
        o = y[0:rows_out, :]
        for p in range(1, pool):
            o = jnp.maximum(o, y[p * rows_out:(p + 1) * rows_out, :])
        # ReLU on the pooled tile only (commutes with max; bias already folded
        # into the matmul via the ones column / bias row).
        o_ref[...] = jnp.maximum(o, 0.0).astype(o_ref.dtype)

    return kernel


def fuse_params(params, c_in: int):
    """Fold BN into conv weights and embed every block into one fused matrix.

    params: list of (k, w[k, C_in, C_out], scale[1, C_out], shift[1, C_out])
      where scale = gamma / sqrt(var + eps)
            shift = (conv_bias - running_mean) * scale + beta
    returns (max_k, k_pad, w_big[k_pad, n_blocks*C_out]) with:
      rows [0, max_k*c_in)      : per-tap weights (BN scale folded, per-block
                                  'same'-padding offsets embedded)
      row  max_k*c_in           : fused bias/BN shift (paired with a ones column)
      rows above                : zero padding up to an 8-aligned K
    """
    n_blocks = len(params)
    c_out = params[0][1].shape[-1]
    max_k = max(k for (k, _, _, _) in params)
    max_left = (max_k - 1) // 2                      # PyTorch 'same' split

    k_used = max_k * c_in + 1                        # +1 bias row
    k_pad = -(-k_used // 8) * 8                      # 61 -> 64 (8-aligned K)

    w_big = jnp.zeros((k_pad, n_blocks * c_out), jnp.float32)
    shifts = []
    for bi, (k, w, scale, shift) in enumerate(params):
        left_k = (k - 1) // 2                        # this block's 'same' left pad
        off_t = max_left - left_k                    # tap offset inside max window
        w_scaled = (w * scale.reshape(1, 1, c_out)).reshape(k * c_in, c_out)
        w_big = w_big.at[off_t * c_in:(off_t + k) * c_in,
                         bi * c_out:(bi + 1) * c_out].set(w_scaled)
        shifts.append(shift.reshape(c_out))
    shift_big = jnp.concatenate(shifts)              # (n_blocks*c_out,)
    w_big = w_big.at[max_k * c_in, :].set(shift_big)  # bias row
    return max_k, k_pad, w_big


@functools.partial(jax.jit, static_argnames=("max_k", "k_pad", "pool"))
def encoder_forward(x, w_big, *, max_k: int, k_pad: int, pool: int = 3):
    """Fused Encoder forward.

    x: (B, L, C_in)  -- PyTorch pre-transpose layout.
    Returns (B, n_blocks*C_out, L // pool)  -- PyTorch NCL layout.
    """
    B, L, C_in = x.shape
    N = w_big.shape[-1]
    assert w_big.shape[0] == k_pad and k_pad >= max_k * C_in + 1
    assert L % pool == 0, "MaxPool windows must not cross batch rows"
    L_out = L // pool
    R = B * L_out                                    # pooled rows per phase
    max_left = (max_k - 1) // 2
    max_right = (max_k - 1) - max_left

    # Pad once to the widest kernel and build the im2col matrix (trace-time,
    # fused by XLA into one producer fusion for the pallas_call input).
    x_pad = jnp.pad(x.astype(jnp.float32),
                    ((0, 0), (max_left, max_right), (0, 0)))
    cols = jnp.concatenate([x_pad[:, t:t + L, :] for t in range(max_k)],
                           axis=-1)                  # (B, L, max_k*C_in)
    # Append ones column (pairs with the bias row of w_big) + zero pad K -> 64.
    extra = k_pad - max_k * C_in - 1
    tail = [jnp.ones((B, L, 1), jnp.float32)]
    if extra:
        tail.append(jnp.zeros((B, L, extra), jnp.float32))
    cols = jnp.concatenate([cols] + tail, axis=-1)   # (B, L, k_pad)
    # Phase-major row ordering: row index = p*R + b*L_out + l_out, so the
    # kernel pools by max-ing `pool` contiguous R-row blocks.
    cols = jnp.transpose(cols.reshape(B, L_out, pool, k_pad), (2, 0, 1, 3))
    cols = cols.reshape(pool * R, k_pad)

    out = pl.pallas_call(
        _make_fused_kernel(pool, R),
        out_shape=jax.ShapeDtypeStruct((R, N), jnp.float32),
        in_specs=[
            pl.BlockSpec(memory_space=pltpu.MemorySpace.VMEM),
            pl.BlockSpec(memory_space=pltpu.MemorySpace.VMEM),
        ],
        out_specs=pl.BlockSpec(memory_space=pltpu.MemorySpace.VMEM),
    )(cols, w_big)

    # Output rows are already (b, l_out)-ordered and channels-last/lane-dense.
    # One final transpose only to match PyTorch's (B, C, L_out) convention;
    # drop it if the downstream consumer accepts channels-last.
    out = out.reshape(B, L_out, N)
    return jnp.transpose(out, (0, 2, 1)).astype(x.dtype)


def _reference_block(x, w, scale, shift, k, pool):
    """Pure-JAX reference for one ConvBlock (channels-last)."""
    B, L, _ = x.shape
    C_out = w.shape[-1]
    left = (k - 1) // 2                      # matches PyTorch padding='same'
    right = (k - 1) - left
    conv = jax.lax.conv_general_dilated(
        x, w, window_strides=(1,), padding=[(left, right)],
        dimension_numbers=("NWC", "WIO", "NWC"))
    y = jnp.maximum(conv * scale[None] + shift[None], 0.0)
    L_out = L // pool
    return jnp.max(y[:, :L_out * pool].reshape(B, L_out, pool, C_out), axis=2)


if __name__ == "__main__":
    B, L, C_IN, C_OUT = 2, 24, 4, 128
    KERNEL_SIZES = [6, 9, 12, 15]
    POOL = 3
    EPS = 1e-5

    key = jax.random.PRNGKey(0)
    keys = jax.random.split(key, 1 + 6 * len(KERNEL_SIZES))
    x = jax.random.normal(keys[0], (B, L, C_IN), jnp.float32)

    params = []
    for i, k in enumerate(KERNEL_SIZES):
        kk = keys[1 + 6 * i: 1 + 6 * (i + 1)]
        w = 0.1 * jax.random.normal(kk[0], (k, C_IN, C_OUT), jnp.float32)
        bias = 0.1 * jax.random.normal(kk[1], (C_OUT,), jnp.float32)
        gamma = 1.0 + 0.1 * jax.random.normal(kk[2], (C_OUT,), jnp.float32)
        beta = 0.1 * jax.random.normal(kk[3], (C_OUT,), jnp.float32)
        run_mean = 0.1 * jax.random.normal(kk[4], (C_OUT,), jnp.float32)
        run_var = jnp.abs(jax.random.normal(kk[5], (C_OUT,), jnp.float32)) + 0.5
        s = gamma / jnp.sqrt(run_var + EPS)
        scale = s.reshape(1, C_OUT)
        shift = ((bias - run_mean) * s + beta).reshape(1, C_OUT)
        params.append((k, w, scale, shift))

    # One-time wrapper-side fusion of all block weights (BN + bias folded in).
    max_k, k_pad, w_big = fuse_params(params, C_IN)

    out = jax.block_until_ready(
        encoder_forward(x, w_big, max_k=max_k, k_pad=k_pad, pool=POOL))

    # Shape check: (B, 4*C_OUT, L//POOL)
    assert out.shape == (B, len(KERNEL_SIZES) * C_OUT, L // POOL), out.shape

    # Numerical check against a per-block pure-JAX reference (un-fused path).
    ref_blocks = [
        jnp.transpose(_reference_block(x, w, scale, shift, k, POOL), (0, 2, 1))
        for (k, w, scale, shift) in params
    ]
    ref = jnp.concatenate(ref_blocks, axis=1)
    err = float(jnp.max(jnp.abs(out - ref)))
    assert jnp.allclose(out, ref, atol=5e-4, rtol=5e-4), err

    print("KERNEL_OK")
</pallas_src>

<mosaic_0001>
module attributes {stable_mosaic.version = 11 : i64} {
  func.func @kernel(%arg0: memref<48x64xf32, #tpu.memory_space<vmem>>, %arg1: memref<64x512xf32, #tpu.memory_space<vmem>>, %arg2: memref<16x512xf32, #tpu.memory_space<vmem>>) attributes {dimension_semantics = [], scalar_prefetch = 0 : i64, scratch_operands = 0 : i64, tpu.core_type = #tpu.core_type<tc>} {
    %c0 = arith.constant 0 : index
    %c0_0 = arith.constant 0 : index
    %0 = vector.load %arg0[%c0, %c0_0] : memref<48x64xf32, #tpu.memory_space<vmem>>, vector<48x64xf32>
    %c0_1 = arith.constant 0 : index
    %c0_2 = arith.constant 0 : index
    %1 = vector.load %arg1[%c0_1, %c0_2] : memref<64x512xf32, #tpu.memory_space<vmem>>, vector<64x512xf32>
    %cst = arith.constant dense<0.000000e+00> : vector<48x512xf32>
    %2 = tpu.matmul %0, %1, %cst {dimension_numbers = #tpu.dot_dimension_numbers<[1], [0], [0], [1], [0, 0, 1, 1], [], []>} : vector<48x64xf32>, vector<64x512xf32>, vector<48x512xf32> -> vector<48x512xf32>
    %3 = vector.extract_strided_slice %2 {offsets = [0, 0], sizes = [16, 512], strides = [1, 1]} : vector<48x512xf32> to vector<16x512xf32>
    %4 = vector.extract_strided_slice %2 {offsets = [16, 0], sizes = [16, 512], strides = [1, 1]} : vector<48x512xf32> to vector<16x512xf32>
    %5 = arith.maximumf %3, %4 : vector<16x512xf32>
    %6 = vector.extract_strided_slice %2 {offsets = [32, 0], sizes = [16, 512], strides = [1, 1]} : vector<48x512xf32> to vector<16x512xf32>
    %7 = arith.maximumf %5, %6 : vector<16x512xf32>
    %cst_3 = arith.constant 0.000000e+00 : f32
    %8 = vector.broadcast %cst_3 : f32 to vector<16x512xf32>
    %9 = arith.maximumf %7, %8 : vector<16x512xf32>
    %c0_4 = arith.constant 0 : index
    %c0_5 = arith.constant 0 : index
    %10 = vector.load %arg2[%c0_4, %c0_5] : memref<16x512xf32, #tpu.memory_space<vmem>>, vector<16x512xf32>
    tpu.vector_store %arg2[%c0_4, %c0_5], %9 {strides = array<i32>} : memref<16x512xf32, #tpu.memory_space<vmem>>, vector<16x512xf32>,
    return
  }
}

</mosaic_0001>

<llo_original>
// kernel: encoder_forward.1
$region0: #{encoder_forward.1}
  #allocation0 [shape = 'u32[]', space=smem, size = 0x4, offset = 0x4, fixed_abs, tag = 'smem constant byte address 0x4 - core index']
  #allocation1 [shape = 'u32[144,128]{1,0:T(1,128)}', space=vmem, size = 0x12000, scoped, tag = 'internal scratch']
  %s0 = inlined_call_operand.vmem [shape: f32[48,64], index: 0, kind: input, shape index: {}]
  %s1 = inlined_call_operand.vmem [shape: f32[64,512], index: 1, kind: input, shape index: {}]
  %s2 = inlined_call_operand.hbm [shape: f32[16,512], index: 2, kind: output, shape index: {}]
  %s3 = sld [smem:[#allocation0]]
  $region18: #{encoder_forward.1} parent=0
    _
  %s5 = ssub.s32 1, %s3
  %s6 = scalar_select 0, %s5, %s3
  $region1: #{encoder_forward.1} parent=0
    #allocation2 [shape = 'u8[32768]{0}', space=vmem, size = 0x8000, scoped, tag = 'output window, operand 0, single buffered']
    #allocation3 [shape = 's32[1]{0}', space=sflag, size = 0x4, scoped, tag = 'scoped memory for encoder_forward.1']
    %7 = vsyncpa [#allocation3], 0
    // Predicated region
    $region2: #{encoder_forward.1} parent=1 // pred_check
      _
    $region3: #{encoder_forward.1} parent=1 // pred_check_branch
      %9 = sbr.rel (0) target = $region5
    $region4: #{encoder_forward.1} parent=1 // pred_region
      _
    $region5: #{encoder_forward.1} parent=1 // pred_fallthru
      _
    // Predicated region
    $region6: #{encoder_forward.1} parent=1 // pred_check
      _
    $region7: #{encoder_forward.1} parent=1 // pred_check_branch
      %11 = sbr.rel (0) target = $region9
    $region8: #{encoder_forward.1} parent=1 // pred_region
      _
    $region9: #{encoder_forward.1} parent=1 // pred_fallthru
      _
    %v12 = vld [vmem:[%s0] sm:$0xff]
    %v13 = vld [vmem:[%s0 + $0x8] sm:$0xff]
    %v14 = vld [vmem:[%s0 + $0x10] sm:$0xff]
    %v15 = vld [vmem:[%s0 + $0x18] sm:$0xff]
    %v16 = vld [vmem:[%s0 + $0x20] sm:$0xff]
    %v17 = vld [vmem:[%s0 + $0x28] sm:$0xff]
    %v18 = vld [vmem:[%s1] sm:$0xff]
    %v19 = vld [vmem:[%s1 + $0x8] sm:$0xff]
    %v20 = vld [vmem:[%s1 + $0x10] sm:$0xff]
    %v21 = vld [vmem:[%s1 + $0x18] sm:$0xff]
    %v22 = vld [vmem:[%s1 + $0x20] sm:$0xff]
    %v23 = vld [vmem:[%s1 + $0x28] sm:$0xff]
    %v24 = vld [vmem:[%s1 + $0x30] sm:$0xff]
    %v25 = vld [vmem:[%s1 + $0x38] sm:$0xff]
    %v26 = vld [vmem:[%s1 + $0x40] sm:$0xff]
    %v27 = vld [vmem:[%s1 + $0x48] sm:$0xff]
    %v28 = vld [vmem:[%s1 + $0x50] sm:$0xff]
    %v29 = vld [vmem:[%s1 + $0x58] sm:$0xff]
    %v30 = vld [vmem:[%s1 + $0x60] sm:$0xff]
    %v31 = vld [vmem:[%s1 + $0x68] sm:$0xff]
    %v32 = vld [vmem:[%s1 + $0x70] sm:$0xff]
    %v33 = vld [vmem:[%s1 + $0x78] sm:$0xff]
    %v34 = vld [vmem:[%s1 + $0x80] sm:$0xff]
    %v35 = vld [vmem:[%s1 + $0x88] sm:$0xff]
    %v36 = vld [vmem:[%s1 + $0x90] sm:$0xff]
    %v37 = vld [vmem:[%s1 + $0x98] sm:$0xff]
    %v38 = vld [vmem:[%s1 + $0xa0] sm:$0xff]
    %v39 = vld [vmem:[%s1 + $0xa8] sm:$0xff]
    %v40 = vld [vmem:[%s1 + $0xb0] sm:$0xff]
    %v41 = vld [vmem:[%s1 + $0xb8] sm:$0xff]
    %v42 = vld [vmem:[%s1 + $0xc0] sm:$0xff]
    %v43 = vld [vmem:[%s1 + $0xc8] sm:$0xff]
    %v44 = vld [vmem:[%s1 + $0xd0] sm:$0xff]
    %v45 = vld [vmem:[%s1 + $0xd8] sm:$0xff]
    %v46 = vld [vmem:[%s1 + $0xe0] sm:$0xff]
    %v47 = vld [vmem:[%s1 + $0xe8] sm:$0xff]
    %v48 = vld [vmem:[%s1 + $0xf0] sm:$0xff]
    %v49 = vld [vmem:[%s1 + $0xf8] sm:$0xff]
    %vm50 = vcmask 523264
    %v52 = vsel %vm50, %v12, 0
    %v55 = vsel %vm50, %v13, 0
    %v58 = vsel %vm50, %v14, 0
    %v61 = vsel %vm50, %v15, 0
    %v64 = vsel %vm50, %v16, 0
    %v67 = vsel %vm50, %v17, 0
    %69 = vmatprep.subr.mxu0 %v19
    %70 = vmatpush1.msra.mxu0 %v18
    %71 = vmatprep.subr.mxu0 %v23
    %72 = vmatpush1.msra.mxu0 %v22
    %73 = vmatprep.subr.mxu0 %v27
    %74 = vmatpush1.msra.mxu0 %v26
    %75 = vmatprep.subr.mxu0 %v31
    %76 = vmatpush1.msra.mxu0 %v30
    %77 = vmatprep.subr.mxu0 %v35
    %78 = vmatpush1.msra.mxu0 %v34
    %79 = vmatprep.subr.mxu0 %v39
    %80 = vmatpush1.msra.mxu0 %v38
    %81 = vmatprep.subr.mxu0 %v43
    %82 = vmatpush1.msra.mxu0 %v42
    %83 = vmatprep.subr.mxu0 %v47
    %84 = vmatpush1.msra.mxu0 %v46
    %85 = vmatprep.subr.mxu0 0.0
    %86 = vmatpush1.msra.mxu0 0.0
    %87 = vmatprep.subr.mxu0 0.0
    %88 = vmatpush1.msra.mxu0 0.0
    %89 = vmatprep.subr.mxu0 0.0
    %90 = vmatpush1.msra.mxu0 0.0
    %91 = vmatprep.subr.mxu0 0.0
    %92 = vmatpush1.msra.mxu0 0.0
    %93 = vmatprep.subr.mxu0 0.0
    %94 = vmatpush1.msra.mxu0 0.0
    %95 = vmatprep.subr.mxu0 0.0
    %96 = vmatpush1.msra.mxu0 0.0
    %97 = vmatprep.subr.mxu0 0.0
    %98 = vmatpush1.msra.mxu0 0.0
    %99 = vmatprep.subr.mxu0 0.0
    %100 = vmatpush1.msra.mxu0 0.0
    %101 = vmatprep.subr.mxu0 0.0
    %102 = vmatpush1.msra.mxu0 0.0
    %103 = vmatprep.subr.mxu0 0.0
    %104 = vmatpush1.msra.mxu0 0.0
    %105 = vmatprep.subr.mxu0 0.0
    %106 = vmatpush1.msra.mxu0 0.0
    %107 = vmatprep.subr.mxu0 0.0
    %108 = vmatpush1.msra.mxu0 0.0
    %109 = vmatprep.subr.mxu0 0.0
    %110 = vmatpush1.msra.mxu0 0.0
    %111 = vmatprep.subr.mxu0 0.0
    %112 = vmatpush1.msra.mxu0 0.0
    %113 = vmatprep.subr.mxu0 0.0
    %114 = vmatpush1.msra.mxu0 0.0
    %115 = vmatprep.subr.mxu0 0.0
    %116 = vmatpush1.msra.mxu0 0.0
    %117 = vmatprep.subr.mxu0 0.0
    %118 = vmatpush1.msra.mxu0 0.0
    %119 = vmatprep.subr.mxu0 0.0
    %120 = vmatpush1.msra.mxu0 0.0
    %121 = vmatprep.subr.mxu0 0.0
    %122 = vmatpush1.msra.mxu0 0.0
    %123 = vmatprep.subr.mxu0 0.0
    %124 = vmatpush1.msra.mxu0 0.0
    %125 = vmatprep.subr.mxu0 0.0
    %126 = vmatpush1.msra.mxu0 0.0
    %127 = vmatprep.subr.mxu0 0.0
    %128 = vmatpush1.msra.mxu0 0.0
    %129 = vmatprep.subr.mxu0 0.0
    %130 = vmatpush1.msra.mxu0 0.0
    %131 = vmatprep.subr.mxu0 0.0
    %132 = vmatpush1.msra.mxu0 0.0
    %133 = vmatprep.mubr.f32.mxu0 0.0
    %134 = vmatmul.mubr.f32.gmra.mrb[0].mxu0 %v52
    %v135 = vpop.f32.mrb[0].mxu0
    %v136 = vadd.f32 0.0, %v135
    %v137 = vpop.f32.mrb[0].mxu0
    %v138 = vadd.f32 0.0, %v137
    %139 = vmatprep.mubr.f32.mxu0 0.0
    %140 = vmatmul.mubr.f32.gmra.mrb[0].mxu0 %v55
    %v141 = vpop.f32.mrb[0].mxu0
    %v142 = vadd.f32 0.0, %v141
    %v143 = vpop.f32.mrb[0].mxu0
    %v144 = vadd.f32 0.0, %v143
    %145 = vmatprep.mubr.f32.mxu0 0.0
    %146 = vmatmul.mubr.f32.gmra.mrb[0].mxu0 %v58
    %v147 = vpop.f32.mrb[0].mxu0
    %v148 = vadd.f32 0.0, %v147
    %v149 = vpop.f32.mrb[0].mxu0
    %v150 = vadd.f32 0.0, %v149
    %151 = vmatprep.mubr.f32.mxu0 0.0
    %152 = vmatmul.mubr.f32.gmra.mrb[0].mxu0 %v61
    %v153 = vpop.f32.mrb[0].mxu0
    %v154 = vadd.f32 0.0, %v153
    %v155 = vpop.f32.mrb[0].mxu0
    %v156 = vadd.f32 0.0, %v155
    %157 = vmatprep.mubr.f32.mxu0 0.0
    %158 = vmatmul.mubr.f32.gmra.mrb[0].mxu0 %v64
    %v159 = vpop.f32.mrb[0].mxu0
    %v160 = vadd.f32 0.0, %v159
    %v161 = vpop.f32.mrb[0].mxu0
    %v162 = vadd.f32 0.0, %v161
    %163 = vmatprep.mubr.f32.mxu0 0.0
    %164 = vmatmul.mubr.f32.gmra.mrb[0].mxu0 %v67
    %v165 = vpop.f32.mrb[0].mxu0
    %v166 = vadd.f32 0.0, %v165
    %v167 = vpop.f32.mrb[0].mxu0
    %v168 = vadd.f32 0.0, %v167
    %169 = vdwg.mxu0
    %170 = vmatprep.subr.mxu0 %v21
    %171 = vmatpush1.msra.mxu0 %v20
    %172 = vmatprep.subr.mxu0 %v25
    %173 = vmatpush1.msra.mxu0 %v24
    %174 = vmatprep.subr.mxu0 %v29
    %175 = vmatpush1.msra.mxu0 %v28
    %176 = vmatprep.subr.mxu0 %v33
    %177 = vmatpush1.msra.mxu0 %v32
    %178 = vmatprep.subr.mxu0 %v37
    %179 = vmatpush1.msra.mxu0 %v36
    %180 = vmatprep.subr.mxu0 %v41
    %181 = vmatpush1.msra.mxu0 %v40
    %182 = vmatprep.subr.mxu0 %v45
    %183 = vmatpush1.msra.mxu0 %v44
    %184 = vmatprep.subr.mxu0 %v49
    %185 = vmatpush1.msra.mxu0 %v48
    %186 = vmatprep.subr.mxu0 0.0
    %187 = vmatpush1.msra.mxu0 0.0
    %188 = vmatprep.subr.mxu0 0.0
    %189 = vmatpush1.msra.mxu0 0.0
    %190 = vmatprep.subr.mxu0 0.0
    %191 = vmatpush1.msra.mxu0 0.0
    %192 = vmatprep.subr.mxu0 0.0
    %193 = vmatpush1.msra.mxu0 0.0
    %194 = vmatprep.subr.mxu0 0.0
    %195 = vmatpush1.msra.mxu0 0.0
    %196 = vmatprep.subr.mxu0 0.0
    %197 = vmatpush1.msra.mxu0 0.0
    %198 = vmatprep.subr.mxu0 0.0
    %199 = vmatpush1.msra.mxu0 0.0
    %200 = vmatprep.subr.mxu0 0.0
    %201 = vmatpush1.msra.mxu0 0.0
    %202 = vmatprep.subr.mxu0 0.0
    %203 = vmatpush1.msra.mxu0 0.0
    %204 = vmatprep.subr.mxu0 0.0
    %205 = vmatpush1.msra.mxu0 0.0
    %206 = vmatprep.subr.mxu0 0.0
    %207 = vmatpush1.msra.mxu0 0.0
    %208 = vmatprep.subr.mxu0 0.0
    %209 = vmatpush1.msra.mxu0 0.0
    %210 = vmatprep.subr.mxu0 0.0
    %211 = vmatpush1.msra.mxu0 0.0
    %212 = vmatprep.subr.mxu0 0.0
    %213 = vmatpush1.msra.mxu0 0.0
    %214 = vmatprep.subr.mxu0 0.0
    %215 = vmatpush1.msra.mxu0 0.0
    %216 = vmatprep.subr.mxu0 0.0
    %217 = vmatpush1.msra.mxu0 0.0
    %218 = vmatprep.subr.mxu0 0.0
    %219 = vmatpush1.msra.mxu0 0.0
    %220 = vmatprep.subr.mxu0 0.0
    %221 = vmatpush1.msra.mxu0 0.0
    %222 = vmatprep.subr.mxu0 0.0
    %223 = vmatpush1.msra.mxu0 0.0
    %224 = vmatprep.subr.mxu0 0.0
    %225 = vmatpush1.msra.mxu0 0.0
    %226 = vmatprep.subr.mxu0 0.0
    %227 = vmatpush1.msra.mxu0 0.0
    %228 = vmatprep.subr.mxu0 0.0
    %229 = vmatpush1.msra.mxu0 0.0
    %230 = vmatprep.subr.mxu0 0.0
    %231 = vmatpush1.msra.mxu0 0.0
    %232 = vmatprep.subr.mxu0 0.0
    %233 = vmatpush1.msra.mxu0 0.0
    %234 = vmatprep.mubr.f32.mxu0 0.0
    %235 = vmatmul.mubr.f32.gmra.mrb[0].mxu0 %v52
    %v236 = vpop.f32.mrb[0].mxu0
    %v237 = vadd.f32 0.0, %v236
    %v238 = vpop.f32.mrb[0].mxu0
    %v239 = vadd.f32 0.0, %v238
    %240 = vmatprep.mubr.f32.mxu0 0.0
    %241 = vmatmul.mubr.f32.gmra.mrb[0].mxu0 %v55
    %v242 = vpop.f32.mrb[0].mxu0
    %v243 = vadd.f32 0.0, %v242
    %v244 = vpop.f32.mrb[0].mxu0
    %v245 = vadd.f32 0.0, %v244
    %246 = vmatprep.mubr.f32.mxu0 0.0
    %247 = vmatmul.mubr.f32.gmra.mrb[0].mxu0 %v58
    %v248 = vpop.f32.mrb[0].mxu0
    %v249 = vadd.f32 0.0, %v248
    %v250 = vpop.f32.mrb[0].mxu0
    %v251 = vadd.f32 0.0, %v250
    %252 = vmatprep.mubr.f32.mxu0 0.0
    %253 = vmatmul.mubr.f32.gmra.mrb[0].mxu0 %v61
    %v254 = vpop.f32.mrb[0].mxu0
    %v255 = vadd.f32 0.0, %v254
    %v256 = vpop.f32.mrb[0].mxu0
    %v257 = vadd.f32 0.0, %v256
    %258 = vmatprep.mubr.f32.mxu0 0.0
    %259 = vmatmul.mubr.f32.gmra.mrb[0].mxu0 %v64
    %v260 = vpop.f32.mrb[0].mxu0
    %v261 = vadd.f32 0.0, %v260
    %v262 = vpop.f32.mrb[0].mxu0
    %v263 = vadd.f32 0.0, %v262
    %264 = vmatprep.mubr.f32.mxu0 0.0
    %265 = vmatmul.mubr.f32.gmra.mrb[0].mxu0 %v67
    %v266 = vpop.f32.mrb[0].mxu0
    %v267 = vadd.f32 0.0, %v266
    %v268 = vpop.f32.mrb[0].mxu0
    %v269 = vadd.f32 0.0, %v268
    %270 = vdwg.mxu0
    %v271 = vmax.f32 %v136, %v148
    %v272 = vmax.f32 %v138, %v150
    %v273 = vmax.f32 %v237, %v249
    %v274 = vmax.f32 %v239, %v251
    %v275 = vmax.f32 %v142, %v154
    %v276 = vmax.f32 %v144, %v156
    %v277 = vmax.f32 %v243, %v255
    %v278 = vmax.f32 %v245, %v257
    %v279 = vmax.f32 %v271, %v160
    %v280 = vmax.f32 %v272, %v162
    %v281 = vmax.f32 %v273, %v261
    %v282 = vmax.f32 %v274, %v263
    %v283 = vmax.f32 %v275, %v166
    %v284 = vmax.f32 %v276, %v168
    %v285 = vmax.f32 %v277, %v267
    %v286 = vmax.f32 %v278, %v269
    %v287 = vmax.f32 %v279, 0.0
    %v288 = vmax.f32 %v280, 0.0
    %v289 = vmax.f32 %v281, 0.0
    %v290 = vmax.f32 %v282, 0.0
    %v291 = vmax.f32 %v283, 0.0
    %v292 = vmax.f32 %v284, 0.0
    %v293 = vmax.f32 %v285, 0.0
    %v294 = vmax.f32 %v286, 0.0
    %295 = vst [vmem:[#allocation2] sm:$0xff] %v287
    %296 = vst [vmem:[#allocation2 + $0x8] sm:$0xff] %v288
    %297 = vst [vmem:[#allocation2 + $0x10] sm:$0xff] %v289
    %298 = vst [vmem:[#allocation2 + $0x18] sm:$0xff] %v290
    %299 = vst [vmem:[#allocation2 + $0x20] sm:$0xff] %v291
    %300 = vst [vmem:[#allocation2 + $0x28] sm:$0xff] %v292
    %301 = vst [vmem:[#allocation2 + $0x30] sm:$0xff] %v293
    %302 = vst [vmem:[#allocation2 + $0x38] sm:$0xff] %v294
    // Predicated region
    $region10: #{encoder_forward.1} parent=1 // pred_check
      _
    $region11: #{encoder_forward.1} parent=1 // pred_check_branch
      %304 = sbr.rel (0) target = $region13
    $region12: #{encoder_forward.1} parent=1 // pred_region
      %s306 = ssub.s32 1024, 1024
      %307 = vsyncadd [#allocation3], %s306
      %s308 = sshll.u32 [#allocation2], 4
      %s309 = int_to_ptr.vmem [resolvable:$true] %s308
      %314 = dma.vmem_to_hbm [thread:$0]  %s309, 1024, %s2, [#allocation3], 512, 512, 32
    $region13: #{encoder_forward.1} parent=1 // pred_fallthru
      _
    // Predicated region
    $region14: #{encoder_forward.1} parent=1 // pred_check
      _
    $region15: #{encoder_forward.1} parent=1 // pred_check_branch
      %316 = sbr.rel (0) target = $region17
    $region16: #{encoder_forward.1} parent=1 // pred_region
      %317 = dma.done [#allocation3], 1024
    $region17: #{encoder_forward.1} parent=1 // pred_fallthru
      _
    %318 = vsyncpa [#allocation3], 1

</llo_original>
